<compile_context>
chip_gen: v6e
topology: v6e:2x2x1
jax: 0.10.0
libtpu: 0.0.40
codegen_flags: <defaults>
</compile_context>

<pallas_src>
import functools

import jax
import jax.numpy as jnp
from jax import lax
from jax.experimental import pallas as pl
from jax.experimental.pallas import tpu as pltpu

IGNORE_INDEX = 0
_LANES = 128
_MAX_TILE = 65536      # raised spatial tile cap (was 8192)
_MIN_TILE = 512        # keep spatial tiles >= 512 lanes when tiling classes
_NBUF = 2              # default double-buffering of the pipelined inputs


def _nll_kernel(x_ref, t_ref, osum_ref, ocnt_ref, sum_acc, cnt_acc, *,
                hw, tile_hw, c_blk, acc_rows, per_split, num_c,
                ignore_index, mask_bounds):
    j = pl.program_id(2)          # spatial tile within this split   (reduction)
    c = pl.program_id(3)          # class tile                       (reduction, innermost)

    @pl.when(jnp.logical_and(j == 0, c == 0))
    def _init():
        sum_acc[...] = jnp.zeros_like(sum_acc)
        cnt_acc[...] = jnp.zeros_like(cnt_acc)

    t = t_ref[0]                                            # (1, tile_hw) int32

    if mask_bounds:
        # Tail / phantom spatial tiles: mask by the *intended* global offset so
        # whatever the DMA actually loaded there can never reach the accumulator.
        p = pl.program_id(1)
        base = (p * per_split + j) * tile_hw
        col = lax.broadcasted_iota(jnp.int32, (1, tile_hw), 1)
        valid = jnp.logical_and(t != ignore_index, (base + col) < hw)
    else:
        valid = t != ignore_index                           # (1, tile_hw) bool

    # Count valid pixels once per spatial tile (not once per class tile).
    if num_c == 1:
        cnt_acc[...] += valid.astype(jnp.float32)
    else:
        @pl.when(c == 0)
        def _count():
            cnt_acc[...] += valid.astype(jnp.float32)

    # Fold the validity mask into the target row instead of AND-ing a full
    # (C, tile) mask; offset by the class-tile base so a local iota can be used.
    t_sel = jnp.where(valid, t, -1)                         # (1, tile_hw)
    if num_c > 1:
        t_sel = t_sel - c * c_blk

    # Native-dtype load, cast in-register.
    x = x_ref[0].astype(jnp.float32)                        # (c_blk, tile_hw)
    cls = lax.broadcasted_iota(jnp.int32, (c_blk, tile_hw), 0)
    masked = jnp.where(cls == t_sel, x, 0.0)                # one-hot select, pre-masked

    # Dense accumulation; fold class groups of `acc_rows` sublanes when possible.
    if c_blk == acc_rows:
        sum_acc[...] += masked
    else:
        sum_acc[...] += masked.reshape(c_blk // acc_rows, acc_rows, tile_hw).sum(axis=0)

    @pl.when(jnp.logical_and(j == pl.num_programs(2) - 1,
                             c == pl.num_programs(3) - 1))
    def _emit():
        osum_ref[...] = jnp.broadcast_to(jnp.sum(sum_acc[...]), osum_ref.shape)
        ocnt_ref[...] = jnp.broadcast_to(jnp.sum(cnt_acc[...]), ocnt_ref.shape)


def _plan(N, C, HW, x_itemsize, *, budget_bytes, max_tile_hw=None, class_block=None):
    """Pick (class block, accumulator rows, spatial tile, split) against the budget."""

    def budget_tile(c_blk, acc_rows):
        # nbuf pipeline buffers of (logits + targets) + the resident accumulators.
        per_px = _NBUF * (c_blk * x_itemsize + 4) + 4 * (acc_rows + 1)
        return budget_bytes // per_px

    # --- class blocking ---------------------------------------------------
    if class_block is not None:
        c_blk = min(int(class_block), C)
        if c_blk < C:
            c_blk = max(8, (c_blk // 8) * 8)      # keep BlockSpec-legal
    elif C <= 8:
        c_blk = C
    elif budget_tile(C, 8) >= _MIN_TILE:
        c_blk = C                                  # full class extent fits
    else:
        per_px_fixed = _NBUF * 4 + 4 * 9
        c_fit = (budget_bytes // _MIN_TILE - per_px_fixed) // (_NBUF * x_itemsize)
        c_blk = max(8, min((C // 8) * 8, (int(c_fit) // 8) * 8))
    num_c = pl.cdiv(C, c_blk)

    # Accumulator sublane density: fold to 8 rows when c_blk is a multiple of 8.
    acc_rows = c_blk if (c_blk <= 8 or c_blk % 8 != 0) else 8

    # --- spatial tiling -----------------------------------------------------
    tile_hw = min(budget_tile(c_blk, acc_rows), _MAX_TILE)
    if max_tile_hw is not None:
        tile_hw = min(tile_hw, int(max_tile_hw))
    tile_hw = max(_LANES, (tile_hw // _LANES) * _LANES)
    if HW <= tile_hw:
        tile_hw, num_hw = HW, 1
    else:
        num_hw = pl.cdiv(HW, tile_hw)

    # Split the spatial reduction so both v7x TensorCores stay busy for small/odd N.
    nsplit = 2 if (N % 2 == 1 and num_hw >= 2) else 1
    per_split = pl.cdiv(num_hw, nsplit)

    mask_bounds = (per_split * nsplit * tile_hw != HW)
    return c_blk, num_c, acc_rows, tile_hw, per_split, nsplit, mask_bounds


def cross_entropy_loss_2d_new(inputs, targets, *, max_tile_hw=None, class_block=None):
    """inputs: (N, C, H, W) float (f32/bf16), targets: (N, H, W) int -> scalar loss."""
    N, C, H, W = inputs.shape
    HW = H * W

    # Contiguous reshapes only; no dtype upcast in the wrapper.
    x = inputs.reshape(N, C, HW)
    t = targets.reshape(N, 1, HW).astype(jnp.int32)

    # Generation-aware VMEM budget + explicit scoped-VMEM limit.
    vmem_cap = 64 * 1024 * 1024
    try:
        cap = int(getattr(pltpu.get_tpu_info(), "vmem_capacity_bytes", 0))
        if cap > 0:
            vmem_cap = cap
    except Exception:
        pass
    budget = max(8 << 20, min(vmem_cap // 2 - (4 << 20), 48 << 20))
    vmem_limit = int(min(budget + (16 << 20), vmem_cap - (4 << 20)))

    c_blk, num_c, acc_rows, tile_hw, per_split, nsplit, mask_bounds = _plan(
        N, C, HW, x.dtype.itemsize, budget_bytes=budget,
        max_tile_hw=max_tile_hw, class_block=class_block)

    num_hw_tiles = pl.cdiv(HW, tile_hw)

    kernel = functools.partial(
        _nll_kernel, hw=HW, tile_hw=tile_hw, c_blk=c_blk, acc_rows=acc_rows,
        per_split=per_split, num_c=num_c, ignore_index=IGNORE_INDEX,
        mask_bounds=mask_bounds)

    def hw_block(p, j):
        idx = p * per_split + j
        if mask_bounds:
            # Clamp phantom (fully padded) spatial tiles to a legal block index;
            # the in-kernel bound mask zeroes their contribution.
            idx = jnp.minimum(idx, num_hw_tiles - 1)
        return idx

    x_map = lambda i, p, j, c: (i, c, hw_block(p, j))
    t_map = lambda i, p, j, c: (i, 0, hw_block(p, j))
    o_map = lambda i, p, j, c: (i, p, 0, 0)

    out_sum, out_cnt = pl.pallas_call(
        kernel,
        out_shape=[jax.ShapeDtypeStruct((N, nsplit, 1, _LANES), jnp.float32),
                   jax.ShapeDtypeStruct((N, nsplit, 1, _LANES), jnp.float32)],
        grid_spec=pltpu.PrefetchScalarGridSpec(
            num_scalar_prefetch=0,
            grid=(N, nsplit, per_split, num_c),
            in_specs=[
                pl.BlockSpec((1, c_blk, tile_hw), x_map),
                pl.BlockSpec((1, 1, tile_hw), t_map),
            ],
            out_specs=[
                pl.BlockSpec((1, 1, 1, _LANES), o_map),
                pl.BlockSpec((1, 1, 1, _LANES), o_map),
            ],
            scratch_shapes=[
                pltpu.VMEM((acc_rows, tile_hw), jnp.float32),  # dense per-lane sums
                pltpu.VMEM((1, tile_hw), jnp.float32),         # per-lane valid counts
            ],
        ),
        compiler_params=pltpu.CompilerParams(
            dimension_semantics=("parallel", "parallel", "arbitrary", "arbitrary"),
            vmem_limit_bytes=vmem_limit),
    )(x, t)

    total_sum = jnp.sum(out_sum[:, :, 0, 0])
    total_cnt = jnp.sum(out_cnt[:, :, 0, 0])
    # Matches PyTorch: if every target == ignore_index this is 0/0 = NaN.
    return -total_sum / total_cnt


def _reference(inputs, targets):
    N, C, H, W = inputs.shape
    x = inputs.reshape(N, C, H * W).astype(jnp.float32)
    t = targets.reshape(N, 1, H * W).astype(jnp.int32)
    picked = jnp.take_along_axis(x, t, axis=1)[:, 0, :]
    valid = (t[:, 0, :] != IGNORE_INDEX).astype(jnp.float32)
    return -jnp.sum(picked * valid) / jnp.sum(valid)


if __name__ == "__main__":
    key = jax.random.PRNGKey(0)
    k1, k2 = jax.random.split(key)

    # Primary case: shapes implied by the module (NCHW logits, int targets).
    N, C, H, W = 2, 4, 16, 16
    inputs = jax.random.normal(k1, (N, C, H, W), dtype=jnp.float32)
    targets = jax.random.randint(k2, (N, H, W), 0, C, dtype=jnp.int32)
    loss = cross_entropy_loss_2d_new(inputs, targets)
    jax.block_until_ready(loss)
    ref = _reference(inputs, targets)
    assert jnp.allclose(loss, ref, rtol=1e-5, atol=1e-5), (loss, ref)

    # Secondary: exercise spatial tail masking, the 2-way spatial split and the
    # folded 8-sublane accumulator (C=16).
    k3, k4 = jax.random.split(k1)
    inputs2 = jax.random.normal(k3, (1, 16, 20, 32), dtype=jnp.float32)
    targets2 = jax.random.randint(k4, (1, 20, 32), 0, 16, dtype=jnp.int32)
    loss2 = cross_entropy_loss_2d_new(inputs2, targets2, max_tile_hw=256)
    ref2 = _reference(inputs2, targets2)
    assert jnp.allclose(loss2, ref2, rtol=1e-5, atol=1e-5), (loss2, ref2)

    # Tertiary: exercise class tiling (forced 8-class blocks with C=10), odd-N
    # spatial split, and a non-multiple-of-128 spatial extent.
    k5, k6 = jax.random.split(k2)
    inputs3 = jax.random.normal(k5, (3, 10, 17, 19), dtype=jnp.float32)
    targets3 = jax.random.randint(k6, (3, 17, 19), 0, 10, dtype=jnp.int32)
    loss3 = cross_entropy_loss_2d_new(inputs3, targets3, max_tile_hw=128,
                                      class_block=8)
    ref3 = _reference(inputs3, targets3)
    assert jnp.allclose(loss3, ref3, rtol=1e-5, atol=1e-5), (loss3, ref3)

    jax.block_until_ready((loss2, loss3))
    print("KERNEL_OK")
</pallas_src>

<mosaic_0001>
module attributes {stable_mosaic.version = 11 : i64} {
  func.func @_nll_kernel(%arg0: i32, %arg1: i32, %arg2: i32, %arg3: i32, %arg4: memref<1x4x256xf32, #tpu.memory_space<vmem>>, %arg5: memref<1x1x256xi32, #tpu.memory_space<vmem>>, %arg6: memref<1x1x1x128xf32, #tpu.memory_space<vmem>>, %arg7: memref<1x1x1x128xf32, #tpu.memory_space<vmem>>, %arg8: memref<4x256xf32, #tpu.memory_space<vmem>>, %arg9: memref<1x256xf32, #tpu.memory_space<vmem>>) attributes {dimension_semantics = [#tpu.dimension_semantics<parallel>, #tpu.dimension_semantics<parallel>, #tpu.dimension_semantics<arbitrary>, #tpu.dimension_semantics<arbitrary>], iteration_bounds = array<i64: 2, 1, 1, 1>, scalar_prefetch = 0 : i64, scratch_operands = 2 : i64, tpu.core_type = #tpu.core_type<tc>, window_params = [{transform_indices = @transform_0, window_bounds = array<i64: 1, 4, 256>}, {transform_indices = @transform_1, window_bounds = array<i64: 1, 1, 256>}, {transform_indices = @transform_2, window_bounds = array<i64: 1, 1, 1, 128>}, {transform_indices = @transform_3, window_bounds = array<i64: 1, 1, 1, 128>}]} {
    %c0_i32 = arith.constant 0 : i32
    %0 = arith.cmpi eq, %arg2, %c0_i32 : i32
    %c0_i32_0 = arith.constant 0 : i32
    %1 = arith.cmpi eq, %arg3, %c0_i32_0 : i32
    %2 = arith.andi %0, %1 : i1
    %3 = arith.extui %2 : i1 to i32
    %c0_i32_1 = arith.constant 0 : i32
    %4 = arith.cmpi ne, %3, %c0_i32_1 : i32
    scf.if %4 {
      %cst_19 = arith.constant 0.000000e+00 : f32
      %31 = vector.broadcast %cst_19 : f32 to vector<4x256xf32>
      %c0_20 = arith.constant 0 : index
      %c0_21 = arith.constant 0 : index
      %32 = vector.load %arg8[%c0_20, %c0_21] : memref<4x256xf32, #tpu.memory_space<vmem>>, vector<4x256xf32>
      tpu.vector_store %arg8[%c0_20, %c0_21], %31 {strides = array<i32>} : memref<4x256xf32, #tpu.memory_space<vmem>>, vector<4x256xf32>,
      %cst_22 = arith.constant 0.000000e+00 : f32
      %33 = vector.broadcast %cst_22 : f32 to vector<1x256xf32>
      %c0_23 = arith.constant 0 : index
      %c0_24 = arith.constant 0 : index
      %34 = vector.load %arg9[%c0_23, %c0_24] : memref<1x256xf32, #tpu.memory_space<vmem>>, vector<1x256xf32>
      tpu.vector_store %arg9[%c0_23, %c0_24], %33 {strides = array<i32>} : memref<1x256xf32, #tpu.memory_space<vmem>>, vector<1x256xf32>,
    } else {
    }
    %c0 = arith.constant 0 : index
    %c0_2 = arith.constant 0 : index
    %c0_3 = arith.constant 0 : index
    %5 = vector.load %arg5[%c0, %c0_2, %c0_3] : memref<1x1x256xi32, #tpu.memory_space<vmem>>, vector<1x1x256xi32>
    %6 = vector.shape_cast %5 : vector<1x1x256xi32> to vector<1x256xi32>
    %c0_i32_4 = arith.constant 0 : i32
    %7 = vector.broadcast %c0_i32_4 : i32 to vector<1x256xi32>
    %8 = arith.cmpi ne, %6, %7 : vector<1x256xi32>
    %c0_5 = arith.constant 0 : index
    %c0_6 = arith.constant 0 : index
    %9 = vector.load %arg9[%c0_5, %c0_6] : memref<1x256xf32, #tpu.memory_space<vmem>>, vector<1x256xf32>
    %10 = arith.extui %8 : vector<1x256xi1> to vector<1x256xi32>
    %11 = arith.sitofp %10 : vector<1x256xi32> to vector<1x256xf32>
    %12 = arith.addf %9, %11 : vector<1x256xf32>
    %c0_7 = arith.constant 0 : index
    %c0_8 = arith.constant 0 : index
    %13 = vector.load %arg9[%c0_7, %c0_8] : memref<1x256xf32, #tpu.memory_space<vmem>>, vector<1x256xf32>
    tpu.vector_store %arg9[%c0_7, %c0_8], %12 {strides = array<i32>} : memref<1x256xf32, #tpu.memory_space<vmem>>, vector<1x256xf32>,
    %c-1_i32 = arith.constant -1 : i32
    %14 = vector.broadcast %c-1_i32 : i32 to vector<1x256xi32>
    %15 = arith.select %8, %6, %14 : vector<1x256xi1>, vector<1x256xi32>
    %c0_9 = arith.constant 0 : index
    %c0_10 = arith.constant 0 : index
    %c0_11 = arith.constant 0 : index
    %16 = vector.load %arg4[%c0_9, %c0_10, %c0_11] : memref<1x4x256xf32, #tpu.memory_space<vmem>>, vector<1x4x256xf32>
    %17 = vector.shape_cast %16 : vector<1x4x256xf32> to vector<4x256xf32>
    %18 = tpu.iota {dimensions = array<i32: 0>} : vector<4x256xi32>
    %19 = vector.broadcast %15 : vector<1x256xi32> to vector<4x256xi32>
    %20 = arith.cmpi eq, %18, %19 : vector<4x256xi32>
    %cst = arith.constant 0.000000e+00 : f32
    %21 = vector.broadcast %cst : f32 to vector<4x256xf32>
    %22 = arith.select %20, %17, %21 : vector<4x256xi1>, vector<4x256xf32>
    %c0_12 = arith.constant 0 : index
    %c0_13 = arith.constant 0 : index
    %23 = vector.load %arg8[%c0_12, %c0_13] : memref<4x256xf32, #tpu.memory_space<vmem>>, vector<4x256xf32>
    %24 = arith.addf %23, %22 : vector<4x256xf32>
    %c0_14 = arith.constant 0 : index
    %c0_15 = arith.constant 0 : index
    %25 = vector.load %arg8[%c0_14, %c0_15] : memref<4x256xf32, #tpu.memory_space<vmem>>, vector<4x256xf32>
    tpu.vector_store %arg8[%c0_14, %c0_15], %24 {strides = array<i32>} : memref<4x256xf32, #tpu.memory_space<vmem>>, vector<4x256xf32>,
    %c0_i32_16 = arith.constant 0 : i32
    %26 = arith.cmpi eq, %arg2, %c0_i32_16 : i32
    %c0_i32_17 = arith.constant 0 : i32
    %27 = arith.cmpi eq, %arg3, %c0_i32_17 : i32
    %28 = arith.andi %26, %27 : i1
    %29 = arith.extui %28 : i1 to i32
    %c0_i32_18 = arith.constant 0 : i32
    %30 = arith.cmpi ne, %29, %c0_i32_18 : i32
    scf.if %30 {
      %c0_19 = arith.constant 0 : index
      %c0_20 = arith.constant 0 : index
      %31 = vector.load %arg8[%c0_19, %c0_20] : memref<4x256xf32, #tpu.memory_space<vmem>>, vector<4x256xf32>
      %32 = vector.shape_cast %31 : vector<4x256xf32> to vector<1x4x256xf32>
      %cst_21 = arith.constant dense<0.000000e+00> : vector<1xf32>
      %33 = vector.multi_reduction <add>, %32, %cst_21 [1, 2] : vector<1x4x256xf32> to vector<1xf32>
      %34 = vector.shape_cast %33 : vector<1xf32> to vector<1x1x1xf32>
      %35 = vector.extract %34[0, 0, 0] : f32 from vector<1x1x1xf32>
      %36 = vector.broadcast %35 : f32 to vector<1x1x1x128xf32>
      %c0_22 = arith.constant 0 : index
      %c0_23 = arith.constant 0 : index
      %c0_24 = arith.constant 0 : index
      %c0_25 = arith.constant 0 : index
      %37 = vector.load %arg6[%c0_22, %c0_23, %c0_24, %c0_25] : memref<1x1x1x128xf32, #tpu.memory_space<vmem>>, vector<1x1x1x128xf32>
      tpu.vector_store %arg6[%c0_22, %c0_23, %c0_24, %c0_25], %36 {strides = array<i32>} : memref<1x1x1x128xf32, #tpu.memory_space<vmem>>, vector<1x1x1x128xf32>,
      %c0_26 = arith.constant 0 : index
      %c0_27 = arith.constant 0 : index
      %38 = vector.load %arg9[%c0_26, %c0_27] : memref<1x256xf32, #tpu.memory_space<vmem>>, vector<1x256xf32>
      %39 = vector.shape_cast %38 : vector<1x256xf32> to vector<1x1x256xf32>
      %cst_28 = arith.constant dense<0.000000e+00> : vector<1xf32>
      %40 = vector.multi_reduction <add>, %39, %cst_28 [1, 2] : vector<1x1x256xf32> to vector<1xf32>
      %41 = vector.shape_cast %40 : vector<1xf32> to vector<1x1x1xf32>
      %42 = vector.extract %41[0, 0, 0] : f32 from vector<1x1x1xf32>
      %43 = vector.broadcast %42 : f32 to vector<1x1x1x128xf32>
      %c0_29 = arith.constant 0 : index
      %c0_30 = arith.constant 0 : index
      %c0_31 = arith.constant 0 : index
      %c0_32 = arith.constant 0 : index
      %44 = vector.load %arg7[%c0_29, %c0_30, %c0_31, %c0_32] : memref<1x1x1x128xf32, #tpu.memory_space<vmem>>, vector<1x1x1x128xf32>
      tpu.vector_store %arg7[%c0_29, %c0_30, %c0_31, %c0_32], %43 {strides = array<i32>} : memref<1x1x1x128xf32, #tpu.memory_space<vmem>>, vector<1x1x1x128xf32>,
    } else {
    }
    return
  }
  func.func @transform_0(%arg0: i32, %arg1: i32, %arg2: i32, %arg3: i32) -> (i32, i32, i32) {
    %c1_i32 = arith.constant 1 : i32
    %0 = arith.muli %arg1, %c1_i32 : i32
    %1 = arith.addi %0, %arg2 : i32
    %c0_i32 = arith.constant 0 : i32
    return %arg0, %arg3, %1 : i32, i32, i32
  }
  func.func @transform_1(%arg0: i32, %arg1: i32, %arg2: i32, %arg3: i32) -> (i32, i32, i32) {
    %c1_i32 = arith.constant 1 : i32
    %0 = arith.muli %arg1, %c1_i32 : i32
    %1 = arith.addi %0, %arg2 : i32
    %c0_i32 = arith.constant 0 : i32
    %c0_i32_0 = arith.constant 0 : i32
    return %arg0, %c0_i32, %1 : i32, i32, i32
  }
  func.func @transform_2(%arg0: i32, %arg1: i32, %arg2: i32, %arg3: i32) -> (i32, i32, i32, i32) {
    %c0_i32 = arith.constant 0 : i32
    %c0_i32_0 = arith.constant 0 : i32
    %c0_i32_1 = arith.constant 0 : i32
    return %arg0, %arg1, %c0_i32, %c0_i32_0 : i32, i32, i32, i32
  }
  func.func @transform_3(%arg0: i32, %arg1: i32, %arg2: i32, %arg3: i32) -> (i32, i32, i32, i32) {
    %c0_i32 = arith.constant 0 : i32
    %c0_i32_0 = arith.constant 0 : i32
    %c0_i32_1 = arith.constant 0 : i32
    return %arg0, %arg1, %c0_i32, %c0_i32_0 : i32, i32, i32, i32
  }
}

</mosaic_0001>

<llo_original>
// kernel: tpu_custom_call.1
$region0: #{tpu_custom_call.1}
  #allocation0 [shape = 'u32[]', space=smem, size = 0x4, offset = 0x4, fixed_abs, tag = 'smem constant byte address 0x4 - core index']
  #allocation1 [shape = 'u32[144,128]{1,0:T(1,128)}', space=vmem, size = 0x12000, scoped, tag = 'internal scratch']
  #allocation2 [shape = 'f32[4,256]{1,0:T(4,128)}', space=vmem, size = 0x1000, scoped, tag = 'scratch operand']
  #allocation3 [shape = 'f32[1,256]{1,0:T(1,128)}', space=vmem, size = 0x400, scoped, tag = 'scratch operand']
  %s0 = inlined_call_operand.hbm [shape: f32[2,4,256], index: 0, kind: input, shape index: {}]
  %s1 = inlined_call_operand.hbm [shape: s32[2,1,256], index: 1, kind: input, shape index: {}]
  %s2 = inlined_call_operand.hbm [shape: f32[2,1,1,128], index: 2, kind: output, shape index: {0}]
  %s3 = inlined_call_operand.hbm [shape: f32[2,1,1,128], index: 3, kind: output, shape index: {1}]
  %4 = xla_tuple %s2, %s3
  %s5 = sld [smem:[#allocation0]]
  $region65: #{tpu_custom_call.1} parent=0
    _
  %s7 = ssub.s32 1, %s5
  %s8 = scalar_select 0, %s7, %s5
  $region1: #{tpu_custom_call.1} parent=0
    #allocation4 [shape = 'u8[8192]{0}', space=vmem, size = 0x2000, scoped, tag = 'input window, operand 0']
    #allocation5 [shape = 's32[2]{0}', space=sflag, size = 0x8, scoped, tag = 'scoped memory for tpu_custom_call.1']
    #allocation6 [shape = 's32[2]{0}', space=sflag, size = 0x8, scoped, tag = 'scoped memory for tpu_custom_call.1']
    #allocation7 [shape = 'u8[2048]{0}', space=vmem, size = 0x800, scoped, tag = 'input window, operand 1']
    #allocation8 [shape = 's32[2]{0}', space=sflag, size = 0x8, scoped, tag = 'scoped memory for tpu_custom_call.1']
    #allocation9 [shape = 'u8[1024]{0}', space=vmem, size = 0x400, scoped, tag = 'output window, operand 0']
    #allocation10 [shape = 'u8[1024]{0}', space=vmem, size = 0x400, scoped, tag = 'output window, operand 1']
    #allocation11 [shape = 's32[2]{0}', space=sflag, size = 0x8, scoped, tag = 'scoped memory for tpu_custom_call.1']
    %9 = vsyncpa [#allocation5], 0
    %s10 = scalar_lea.sflag [#allocation5], 1
    %11 = vsyncpa %s10, 0
    %12 = vsyncpa [#allocation8], 0
    %s13 = scalar_lea.sflag [#allocation8], 1
    %14 = vsyncpa %s13, 0
    %15 = vsyncpa [#allocation6], 0
    %s16 = scalar_lea.sflag [#allocation6], 1
    %17 = vsyncpa %s16, 0
    %18 = vsyncpa [#allocation11], 0
    %s19 = scalar_lea.sflag [#allocation11], 1
    %20 = vsyncpa %s19, 0
    loop: start=0, step=1, limit=4
    $region2: #{tpu_custom_call.1} parent=1 // loop_pre_header
      _
    $region3: #{tpu_custom_call.1} parent=1 // loop_header
      %s22 = sphi 0, %s26
      %p23 = scmp.ge.s32.totalorder %s22, 4
      %s29 = sphi 0, %s55
      %s30 = sphi 0, %s51
      %s31 = sphi 0, %s47
      %s32 = sphi 0, %s43
      %s33 = sphi 0, %s29
      %s34 = sphi 0, %s30
      %s35 = sphi 0, %s31
      %s36 = sphi 0, %s32
      %s37 = sphi 0, %s33
      %s38 = sphi 0, %s34
      %s39 = sphi 0, %s35
      %s40 = sphi 0, %s36
      %s64 = sphi 0, %s66
      %s67 = sphi 0, %s64
      %s68 = sphi 0, %s67
      %s84 = sphi 0, %s68
      %s94 = sphi 0, %s96
      %s97 = sphi 0, %s94
      %s98 = sphi 0, %s97
      %s114 = sphi 0, %s98
      %s122 = sphi 0, %s124
      %s125 = sphi 0, %s122
      %s126 = sphi 0, %s125
      %s142 = sphi 0, %s126
      %s150 = sphi 0, %s152
      %s153 = sphi 0, %s150
      %s154 = sphi 0, %s153
      %s170 = sphi 0, %s154
    $region4: #{tpu_custom_call.1} parent=1 // loop_header_branch
      %25 = sbr.rel (%p23) target = $region8
    $region5: #{tpu_custom_call.1} parent=1 // loop_body
      %s27 = ssub.s32 %s22, 1
      %s28 = ssub.s32 %s22, 2
      %s41 = sadd.s32 1, %s32
      %p42 = scmp.ge.s32.totalorder %s41, 1
      %s43 = scalar_select %p42, 0, %s41
      %s44 = sadd.s32 1, %s31
      %s45 = scalar_select %p42, %s44, %s31
      %p46 = scmp.ge.s32.totalorder %s45, 1
      %s47 = scalar_select %p46, 0, %s45
      %s48 = sadd.s32 1, %s30
      %s49 = scalar_select %p46, %s48, %s30
      %p50 = scmp.ge.s32.totalorder %s49, 1
      %s51 = scalar_select %p50, 0, %s49
      %s52 = sadd.s32 1, %s29
      %s53 = scalar_select %p50, %s52, %s29
      %p54 = scmp.ge.s32.totalorder %s53, 2
      %s55 = scalar_select %p54, 0, %s53
      %s56 = sadd.s32 %s30, %s31
      %s57 = sadd.s32 %s51, %s47
      %s58 = ssub.s32 %s29, %s55
      %s59 = ssub.s32 %s32, %s43
      %s60 = sor.u32 %s58, %s59
      %s61 = ssub.s32 %s56, %s57
      %s62 = sor.u32 %s60, %s61
      %p63 = scmp.eq.s32.totalorder %s62, 0
      %s65 = sadd.s32 %s64, 1
      %s66 = scalar_select %p63, %s64, %s65
      %p69 = pneg %p63
      %p70 = scmp.eq.s32.totalorder %s22, 1
      %p71 = por %p69, %p70
      %p72 = scmp.ne.s32.totalorder %s64, %s67
      %p73 = scmp.eq.s32.totalorder %s22, 0
      %p74 = por %p72, %p73
      %p75 = scmp.ne.s32.totalorder %s64, %s67
      %p76 = scmp.eq.s32.totalorder %s27, 1
      %p77 = por %p75, %p76
      %p78 = scmp.ne.s32.totalorder %s67, %s68
      %p79 = scmp.eq.s32.totalorder %s27, 0
      %p80 = por %p78, %p79
      %p81 = scmp.ne.s32.totalorder %s67, %s68
      %p82 = scmp.eq.s32.totalorder %s28, 1
      %p83 = por %p81, %p82
      %p85 = scmp.ne.s32.totalorder %s68, %s84
      %p86 = scmp.eq.s32.totalorder %s28, 0
      %p87 = por %p85, %p86
      %s88 = sadd.s32 %s30, %s31
      %s89 = sadd.s32 %s51, %s47
      %s90 = ssub.s32 %s29, %s55
      %s91 = ssub.s32 %s88, %s89
      %s92 = sor.u32 %s90, %s91
      %p93 = scmp.eq.s32.totalorder %s92, 0
      %s95 = sadd.s32 %s94, 1
      %s96 = scalar_select %p93, %s94, %s95
      %p99 = pneg %p93
      %p100 = scmp.eq.s32.totalorder %s22, 1
      %p101 = por %p99, %p100
      %p102 = scmp.ne.s32.totalorder %s94, %s97
      %p103 = scmp.eq.s32.totalorder %s22, 0
      %p104 = por %p102, %p103
      %p105 = scmp.ne.s32.totalorder %s94, %s97
      %p106 = scmp.eq.s32.totalorder %s27, 1
      %p107 = por %p105, %p106
      %p108 = scmp.ne.s32.totalorder %s97, %s98
      %p109 = scmp.eq.s32.totalorder %s27, 0
      %p110 = por %p108, %p109
      %p111 = scmp.ne.s32.totalorder %s97, %s98
      %p112 = scmp.eq.s32.totalorder %s28, 1
      %p113 = por %p111, %p112
      %p115 = scmp.ne.s32.totalorder %s98, %s114
      %p116 = scmp.eq.s32.totalorder %s28, 0
      %p117 = por %p115, %p116
      %s118 = ssub.s32 %s29, %s55
      %s119 = ssub.s32 %s30, %s51
      %s120 = sor.u32 %s118, %s119
      %p121 = scmp.eq.s32.totalorder %s120, 0
      %s123 = sadd.s32 %s122, 1
      %s124 = scalar_select %p121, %s122, %s123
      %p127 = pneg %p121
      %p128 = scmp.eq.s32.totalorder %s22, 1
      %p129 = por %p127, %p128
      %p130 = scmp.ne.s32.totalorder %s122, %s125
      %p131 = scmp.eq.s32.totalorder %s22, 0
      %p132 = por %p130, %p131
      %p133 = scmp.ne.s32.totalorder %s122, %s125
      %p134 = scmp.eq.s32.totalorder %s27, 1
      %p135 = por %p133, %p134
      %p136 = scmp.ne.s32.totalorder %s125, %s126
      %p137 = scmp.eq.s32.totalorder %s27, 0
      %p138 = por %p136, %p137
      %p139 = scmp.ne.s32.totalorder %s125, %s126
      %p140 = scmp.eq.s32.totalorder %s28, 1
      %p141 = por %p139, %p140
      %p143 = scmp.ne.s32.totalorder %s126, %s142
      %p144 = scmp.eq.s32.totalorder %s28, 0
      %p145 = por %p143, %p144
      %s146 = ssub.s32 %s29, %s55
      %s147 = ssub.s32 %s30, %s51
      %s148 = sor.u32 %s146, %s147
      %p149 = scmp.eq.s32.totalorder %s148, 0
      %s151 = sadd.s32 %s150, 1
      %s152 = scalar_select %p149, %s150, %s151
      %p155 = pneg %p149
      %p156 = scmp.eq.s32.totalorder %s22, 1
      %p157 = por %p155, %p156
      %p158 = scmp.ne.s32.totalorder %s150, %s153
      %p159 = scmp.eq.s32.totalorder %s22, 0
      %p160 = por %p158, %p159
      %p161 = scmp.ne.s32.totalorder %s150, %s153
      %p162 = scmp.eq.s32.totalorder %s27, 1
      %p163 = por %p161, %p162
      %p164 = scmp.ne.s32.totalorder %s153, %s154
      %p165 = scmp.eq.s32.totalorder %s27, 0
      %p166 = por %p164, %p165
      %p167 = scmp.ne.s32.totalorder %s153, %s154
      %p168 = scmp.eq.s32.totalorder %s28, 1
      %p169 = por %p167, %p168
      %p171 = scmp.ne.s32.totalorder %s154, %s170
      %p172 = scmp.eq.s32.totalorder %s28, 0
      %p173 = por %p171, %p172
      %p174 = scmp.le.s32.totalorder 1, %s22
      %p175 = scmp.lt.s32.totalorder %s22, 3
      %p176 = pnand %p174, %p175
      %p177 = pneg %p176
      // Predicated region
      $region9: #{tpu_custom_call.1} parent=5 // pred_check
        _
      $region10: #{tpu_custom_call.1} parent=5 // pred_check_branch
        %179 = sbr.rel (%p176) target = $region12
      $region11: #{tpu_custom_call.1} parent=5 // pred_region
        %s180 = ssub.s32 %s22, 1
      $region12: #{tpu_custom_call.1} parent=5 // pred_fallthru
        _
      %p181 = scmp.lt.s32.totalorder %s22, 2
      // Predicated region
      $region13: #{tpu_custom_call.1} parent=5 // pred_check
        %p182 = pneg %p181
      $region14: #{tpu_custom_call.1} parent=5 // pred_check_branch
        %184 = sbr.rel (%p182) target = $region16
      $region15: #{tpu_custom_call.1} parent=5 // pred_region
        // Predicated region
        $region17: #{tpu_custom_call.1} parent=15 // pred_check
          %p185 = pneg %p74
        $region18: #{tpu_custom_call.1} parent=15 // pred_check_branch
          %187 = sbr.rel (%p185) target = $region20
        $region19: #{tpu_custom_call.1} parent=15 // pred_region
          %s188 = sand.u32 %s64, 1
          %s189 = scalar_lea.sflag [#allocation5], %s188
          %s190 = sand.u32 %s64, 1
          %s191 = smul.addr %s190, 8
          %s192 = scalar_lea.vmem [#allocation4], %s191
          %s193 = sadd.s32 %s30, %s31
          %s194 = smul.u32 2, %s193
          %s196 = ssub.s32 128, 128
          %197 = vsyncadd %s189, %s196
          %s198 = smul.addr %s32, 2
          %s199 = sadd.s32 %s194, %s198
          %s200 = smul.addr %s29, 2
          %s201 = sadd.s32 %s199, %s200
          %s202 = smul.addr %s201, 64
          %s203 = scalar_lea.hbm %s0, %s202
          %s205 = sshll.u32 %s192, 4
          %s206 = int_to_ptr.vmem [resolvable:$true] %s205
          %208 = dma.hbm_to_vmem [thread:$0]  %s203, 128, %s206, %s189
        $region20: #{tpu_custom_call.1} parent=15 // pred_fallthru
          _
        // Predicated region
        $region21: #{tpu_custom_call.1} parent=15 // pred_check
          %p209 = pneg %p104
        $region22: #{tpu_custom_call.1} parent=15 // pred_check_branch
          %211 = sbr.rel (%p209) target = $region24
        $region23: #{tpu_custom_call.1} parent=15 // pred_region
          %s212 = sand.u32 %s94, 1
          %s213 = scalar_lea.sflag [#allocation8], %s212
          %s214 = sand.u32 %s94, 1
          %s215 = smul.addr %s214, 2
          %s216 = scalar_lea.vmem [#allocation7], %s215
          %s217 = sadd.s32 %s30, %s31
          %s218 = smul.u32 2, %s217
          %s220 = ssub.s32 32, 32
          %221 = vsyncadd %s213, %s220
          %s222 = smul.addr %s29, 2
          %s223 = sadd.s32 %s218, %s222
          %s224 = smul.addr %s223, 16
          %s225 = scalar_lea.hbm %s1, %s224
          %s227 = sshll.u32 %s216, 4
          %s228 = int_to_ptr.vmem [resolvable:$true] %s227
          %230 = dma.hbm_to_vmem [thread:$0]  %s225, 32, %s228, %s213
        $region24: #{tpu_custom_call.1} parent=15 // pred_fallthru
          _
      $region16: #{tpu_custom_call.1} parent=5 // pred_fallthru
        _
      %p231 = scmp.le.s32.totalorder 1, %s22
      %p232 = scmp.lt.s32.totalorder %s22, 3
      %p233 = pnand %p231, %p232
      %p234 = pneg %p233
      // Predicated region
      $region25: #{tpu_custom_call.1} parent=5 // pred_check
        _
      $region26: #{tpu_custom_call.1} parent=5 // pred_check_branch
        %236 = sbr.rel (%p233) target = $region28
      $region27: #{tpu_custom_call.1} parent=5 // pred_region
        %s237 = ssub.s32 %s22, 1
        %s238 = sand.u32 %s67, 1
        %s239 = scalar_lea.sflag [#allocation5], %s238
        %s240 = sand.u32 %s67, 1
        %s241 = smul.addr %s240, 8
        %s242 = scalar_lea.vmem [#allocation4], %s241
        // Predicated region
        $region29: #{tpu_custom_call.1} parent=27 // pred_check
          %p243 = pneg %p80
        $region30: #{tpu_custom_call.1} parent=27 // pred_check_branch
          %245 = sbr.rel (%p243) target = $region32
        $region31: #{tpu_custom_call.1} parent=27 // pred_region
          %246 = dma.done %s239, 128
        $region32: #{tpu_custom_call.1} parent=27 // pred_fallthru
          _
        %s247 = sand.u32 %s97, 1
        %s248 = scalar_lea.sflag [#allocation8], %s247
        %s249 = sand.u32 %s97, 1
        %s250 = smul.addr %s249, 2
        %s251 = scalar_lea.vmem [#allocation7], %s250
        // Predicated region
        $region33: #{tpu_custom_call.1} parent=27 // pred_check
          %p252 = pneg %p110
        $region34: #{tpu_custom_call.1} parent=27 // pred_check_branch
          %254 = sbr.rel (%p252) target = $region36
        $region35: #{tpu_custom_call.1} parent=27 // pred_region
          %255 = dma.done %s248, 32
        $region36: #{tpu_custom_call.1} parent=27 // pred_fallthru
          _
        %s256 = sand.u32 %s67, 1
        %s257 = scalar_lea.sflag [#allocation5], %s256
        %s258 = sand.u32 %s67, 1
        %s259 = smul.addr %s258, 8
        %s260 = scalar_lea.vmem [#allocation4], %s259
        %p261 = pneg %p80
        %p262 = pneg %p77
        %s263 = sand.u32 %s97, 1
        %s264 = scalar_lea.sflag [#allocation8], %s263
        %s265 = sand.u32 %s97, 1
        %s266 = smul.addr %s265, 2
        %s267 = scalar_lea.vmem [#allocation7], %s266
        %p268 = pneg %p110
        %p269 = pneg %p107
        %p270 = pneg %p138
        %p271 = pneg %p135
        %s272 = sand.u32 %s125, 1
        %s273 = scalar_lea.sflag [#allocation6], %s272
        %s274 = sand.u32 %s125, 1
        %s275 = scalar_lea.vmem [#allocation9], %s274
        %p276 = pneg %p166
        %p277 = pneg %p163
        %s278 = sand.u32 %s153, 1
        %s279 = scalar_lea.sflag [#allocation11], %s278
        %s280 = sand.u32 %s153, 1
        %s281 = scalar_lea.vmem [#allocation10], %s280
        %s282 = sadd.s32 %s34, %s35
        %s283 = smul.u32 2, %s282
        %s284 = sadd.s32 %s34, %s35
        %s285 = smul.u32 2, %s284
        %p286 = scmp.eq.s32.totalorder %s35, 0
        %p287 = scmp.eq.s32.totalorder %s36, 0
        %p288 = pnand %p286, %p287
        %p289 = pneg %p288
        // Predicated region
        $region37: #{tpu_custom_call.1} parent=27 // pred_check
          _
        $region38: #{tpu_custom_call.1} parent=27 // pred_check_branch
          %291 = sbr.rel (%p288) target = $region40
        $region39: #{tpu_custom_call.1} parent=27 // pred_region
          %292 = vst [vmem:[#allocation2] sm:$0xff] 0.0
          %v293 = vlaneseq
          %vm294 = vcmp.ge.s32.totalorder %v293, 0
          %vm295 = vcmp.lt.s32.totalorder %v293, 256
          %vm296 = vmand %vm294, %vm295
          %297 = vst.msk [vmem:[#allocation3] sm:$0x3] %vm296, 0.0
        $region40: #{tpu_custom_call.1} parent=27 // pred_fallthru
          _
        %v298 = vld [vmem:[%s251] sm:$0x3]
        %vm299 = vcmp.ne.s32.totalorder %v298, 0
        %v300 = vld [vmem:[#allocation3] sm:$0x3]
        %v301 = vsel %vm299, 1, 0
        %v302 = vcvt.s32.f32 %v301
        %v303 = vadd.f32 %v300, %v302
        %v304 = vlaneseq
        %vm305 = vcmp.ge.s32.totalorder %v304, 0
        %vm306 = vcmp.lt.s32.totalorder %v304, 256
        %vm307 = vmand %vm305, %vm306
        %308 = vst.msk [vmem:[#allocation3] sm:$0x3] %vm307, %v303
        %v309 = vsel %vm299, %v298, 4294967295
        %v310 = vld [vmem:[%s242] sm:$0xff]
        %v311 = vlaneseq
        %v312 = vshrl.u32 %v311, 7
        %v313 = vlaneseq
        %v314 = vshrl.u32 %v313, 7
        %v315 = vsub.s32 0, %v314
        %v316 = vrot.slane %v309, %v315
        %v317 = vlaneseq
        %v318 = vshrl.u32 %v317, 7
        %v319 = vsub.s32 1, %v318
        %v320 = vrot.slane %v309, %v319
        %vm321 = vcmp.eq.s32.totalorder %v312, %v316
        %vm322 = vcmp.eq.s32.totalorder %v312, %v320
        %v324 = vcombine.high %v310, %v310
        %v326 = vsel %vm321, %v310, 0.0
        %v327 = vsel %vm322, %v324, 0.0
        %v328 = vld [vmem:[#allocation2] sm:$0xff]
        %v331 = vcombine.low %v326, %v327
        %v333 = vadd.f32 %v328, %v331
        %334 = vst [vmem:[#allocation2] sm:$0xff] %v333
        // Predicated region
        $region41: #{tpu_custom_call.1} parent=27 // pred_check
          _
        $region42: #{tpu_custom_call.1} parent=27 // pred_check_branch
          %336 = sbr.rel (%p288) target = $region44
        $region43: #{tpu_custom_call.1} parent=27 // pred_region
          %v337 = vld [vmem:[#allocation2] sm:$0xff]
          %v339 = vcombine.high %v337, %v337
          %vm341 = vcmask 1043456
          %v342 = vsel %vm341, %v337, 0.0
          %v343 = vsel %vm341, %v339, 0.0
          %v344 = vadd.f32 %v342, %v343
          %345 = vadd.xlane.f32.xlu0 %v344
          %v346 = vpop.xlane.xlu0 %345
          %v347 = vrot.slane %v346, 4
          %v348 = vadd.f32 %v346, %v347
          %v349 = vrot.slane %v348, 2
          %v350 = vadd.f32 %v348, %v349
          %v351 = vrot.slane %v350, 1
          %v352 = vadd.f32 %v350, %v351
          %s353 = vtos %v352
          %v354 = vstv %s353
          %355 = vst [vmem:[%s275] sm:$0x1] %v354
          %v356 = vld [vmem:[#allocation3] sm:$0x3]
          %v358 = vlaneseq
          %v359 = vshrl.u32 %v358, 7
          %v360 = vsub.s32 0, %v359
          %v361 = vrot.slane %v356, %v360
          %v362 = vlaneseq
          %v363 = vshrl.u32 %v362, 7
          %v364 = vsub.s32 1, %v363
          %v365 = vrot.slane %v356, %v364
          %vm368 = vcmask 1040384
          %v369 = vsel %vm368, %v361, 0.0
          %v370 = vsel %vm368, %v365, 0.0
          %v371 = vadd.f32 %v369, %v370
          %372 = vadd.xlane.f32.xlu0 %v371
          %v373 = vpop.xlane.xlu0 %372
          %v374 = vrot.slane %v373, 4
          %v375 = vadd.f32 %v373, %v374
          %v376 = vrot.slane %v375, 2
          %v377 = vadd.f32 %v375, %v376
          %v378 = vrot.slane %v377, 1
          %v379 = vadd.f32 %v377, %v378
          %s380 = vtos %v379
          %v381 = vstv %s380
          %382 = vst [vmem:[%s281] sm:$0x1] %v381
        $region44: #{tpu_custom_call.1} parent=27 // pred_fallthru
          _
        %s383 = sand.u32 %s125, 1
        %s384 = scalar_lea.sflag [#allocation6], %s383
        %s385 = sand.u32 %s125, 1
        %s386 = scalar_lea.vmem [#allocation9], %s385
        %s387 = sand.u32 %s153, 1
        %s388 = scalar_lea.sflag [#allocation11], %s387
        %s389 = sand.u32 %s153, 1
        %s390 = scalar_lea.vmem [#allocation10], %s389
        // Predicated region
        $region45: #{tpu_custom_call.1} parent=27 // pred_check
          %p391 = pneg %p135
        $region46: #{tpu_custom_call.1} parent=27 // pred_check_branch
          %393 = sbr.rel (%p391) target = $region48
        $region47: #{tpu_custom_call.1} parent=27 // pred_region
          %s395 = ssub.s32 16, 16
          %396 = vsyncadd %s384, %s395
          %s397 = sadd.s32 %s34, %s33
          %s398 = smul.addr %s397, 16
          %s399 = scalar_lea.hbm %s2, %s398
          %s401 = sshll.u32 %s386, 4
          %s402 = int_to_ptr.vmem [resolvable:$true] %s401
          %404 = dma.vmem_to_hbm [thread:$0]  %s402, 16, %s399, %s384
        $region48: #{tpu_custom_call.1} parent=27 // pred_fallthru
          _
        // Predicated region
        $region49: #{tpu_custom_call.1} parent=27 // pred_check
          %p405 = pneg %p163
        $region50: #{tpu_custom_call.1} parent=27 // pred_check_branch
          %407 = sbr.rel (%p405) target = $region52
        $region51: #{tpu_custom_call.1} parent=27 // pred_region
          %s409 = ssub.s32 16, 16
          %410 = vsyncadd %s388, %s409
          %s411 = sadd.s32 %s34, %s33
          %s412 = smul.addr %s411, 16
          %s413 = scalar_lea.hbm %s3, %s412
          %s415 = sshll.u32 %s390, 4
          %s416 = int_to_ptr.vmem [resolvable:$true] %s415
          %418 = dma.vmem_to_hbm [thread:$0]  %s416, 16, %s413, %s388
        $region52: #{tpu_custom_call.1} parent=27 // pred_fallthru
          _
      $region28: #{tpu_custom_call.1} parent=5 // pred_fallthru
        _
      %p419 = scmp.le.s32.totalorder 2, %s22
      // Predicated region
      $region53: #{tpu_custom_call.1} parent=5 // pred_check
        %p420 = pneg %p419
      $region54: #{tpu_custom_call.1} parent=5 // pred_check_branch
        %422 = sbr.rel (%p420) target = $region56
      $region55: #{tpu_custom_call.1} parent=5 // pred_region
        %s423 = ssub.s32 %s22, 2
        // Predicated region
        $region57: #{tpu_custom_call.1} parent=55 // pred_check
          %p424 = pneg %p141
        $region58: #{tpu_custom_call.1} parent=55 // pred_check_branch
          %426 = sbr.rel (%p424) target = $region60
        $region59: #{tpu_custom_call.1} parent=55 // pred_region
          %s427 = sand.u32 %s126, 1
          %s428 = scalar_lea.sflag [#allocation6], %s427
          %s429 = sand.u32 %s126, 1
          %s430 = scalar_lea.vmem [#allocation9], %s429
          %431 = dma.done %s428, 16
        $region60: #{tpu_custom_call.1} parent=55 // pred_fallthru
          _
        // Predicated region
        $region61: #{tpu_custom_call.1} parent=55 // pred_check
          %p432 = pneg %p169
        $region62: #{tpu_custom_call.1} parent=55 // pred_check_branch
          %434 = sbr.rel (%p432) target = $region64
        $region63: #{tpu_custom_call.1} parent=55 // pred_region
          %s435 = sand.u32 %s154, 1
          %s436 = scalar_lea.sflag [#allocation11], %s435
          %s437 = sand.u32 %s154, 1
          %s438 = scalar_lea.vmem [#allocation10], %s437
          %439 = dma.done %s436, 16
        $region64: #{tpu_custom_call.1} parent=55 // pred_fallthru
          _
      $region56: #{tpu_custom_call.1} parent=5 // pred_fallthru
        _
    $region6: #{tpu_custom_call.1} parent=1 // loop_footer
      %s26 = sadd.s32 1, %s22
    $region7: #{tpu_custom_call.1} parent=1 // loop_footer_branch
      %21 = sbr.rel target = $region3
    $region8: #{tpu_custom_call.1} parent=1 // loop_exit
      _
    %440 = vsyncpa [#allocation5], 1
    %s441 = scalar_lea.sflag [#allocation5], 1
    %442 = vsyncpa %s441, 1
    %443 = vsyncpa [#allocation8], 1
    %s444 = scalar_lea.sflag [#allocation8], 1
    %445 = vsyncpa %s444, 1
    %446 = vsyncpa [#allocation6], 1
    %s447 = scalar_lea.sflag [#allocation6], 1
    %448 = vsyncpa %s447, 1
    %449 = vsyncpa [#allocation11], 1
    %s450 = scalar_lea.sflag [#allocation11], 1
    %451 = vsyncpa %s450, 1

</llo_original>
